<compile_context>
chip_gen: v5e
topology: v5e:2x2
jax: 0.10.0
libtpu: 0.0.40
codegen_flags: <defaults>
</compile_context>

<pallas_src>
import jax
import jax.numpy as jnp
from jax import lax
from jax.experimental import pallas as pl
from jax.experimental.pallas import tpu as pltpu


def _model_kernel(p_ref, o_ref):
    # p_ref : (10,) f32, SMEM  layout: [ x(C,N) row-major (4) | W(OUT,IN) row-major (4) | b (2) ]
    # o_ref : (N, OUT) f32, VMEM
    n, out_f = o_ref.shape

    # x was passed as x.reshape(C*N) (row-major over (C, N)), so
    # xT[n, c] = x[0, c, n] = p[c*N + n].
    x00 = p_ref[0]   # xT[0, 0]
    x10 = p_ref[1]   # xT[1, 0]
    x01 = p_ref[2]   # xT[0, 1]
    x11 = p_ref[3]   # xT[1, 1]
    # W row-major: W[k, c] = p[4 + k*IN + c]
    w00 = p_ref[4]
    w01 = p_ref[5]
    w10 = p_ref[6]
    w11 = p_ref[7]
    b0 = p_ref[8]
    b1 = p_ref[9]

    sub = lax.broadcasted_iota(jnp.int32, (n, out_f), 0)    # row index n
    lane = lax.broadcasted_iota(jnp.int32, (n, out_f), 1)   # col index k
    sub0 = sub == 0
    lane0 = lane == 0

    # Columns of xT broadcast across lanes (scalar -> vector broadcast, free).
    xc0 = jnp.where(sub0, x00, x10)          # xT[n, 0]
    xc1 = jnp.where(sub0, x01, x11)          # xT[n, 1]
    xt = jnp.where(lane0, xc0, xc1)          # xT[n, k]   (k == c since C == OUT == 2)

    # W / b laid along lanes once (col k holds W[k, :] and b[k]).
    wc0 = jnp.where(lane0, w00, w10)         # W[k, 0]
    wc1 = jnp.where(lane0, w01, w11)         # W[k, 1]
    bv = jnp.where(lane0, b0, b1)            # b[k]

    # v3 = relu(xT @ W.T + b): rows built straight from SMEM scalars so the
    # v4 contraction never has to sublane-slice a freshly computed vreg.
    v3r0 = jnp.maximum(x00 * wc0 + x01 * wc1 + bv, 0.0)     # v3[0, k]
    v3r1 = jnp.maximum(x10 * wc0 + x11 * wc1 + bv, 0.0)     # v3[1, k]
    v3 = jnp.where(sub0, v3r0, v3r1)                         # v3[n, k]

    # v4 = xT @ v3, contraction unrolled as broadcast FMAs (no MXU / XLU).
    v4 = xc0 * v3r0 + xc1 * v3r1                             # (N, OUT)

    # Elementwise tail: v5 = relu(xT * v3) + v3 ; out = v5 * v4 + v4
    v5 = jnp.maximum(xt * v3, 0.0) + v3
    o_ref[...] = v5 * v4 + v4


@jax.jit
def model_forward(x, w, b):
    """x: (B, C, N) f32, w: (OUT, IN) f32, b: (OUT,) f32 -> (B, N, OUT) f32."""
    B, C, N = x.shape
    OUT, IN = w.shape
    assert B == 1 and C == 2 and N == 2 and OUT == 2 and IN == 2

    # One flat scalar table: x (free bitcast of the original layout), W, b.
    packed = jnp.concatenate(
        [x.reshape(C * N), w.reshape(OUT * IN), b]
    ).astype(jnp.float32)                                    # (10,)

    out2d = pl.pallas_call(
        _model_kernel,
        out_shape=jax.ShapeDtypeStruct((N, OUT), jnp.float32),
        in_specs=[
            pl.BlockSpec(memory_space=pltpu.MemorySpace.SMEM),   # packed scalars
        ],
        out_specs=pl.BlockSpec(memory_space=pltpu.MemorySpace.VMEM),
        cost_estimate=pl.CostEstimate(flops=40, transcendentals=0,
                                      bytes_accessed=80),
        # Single invocation, no grid / pipelining: working set is a few bytes.
    )(packed)

    return out2d.reshape(B, N, OUT)


def model_forward_ref(x, w, b):
    """Pure-JAX reference for correctness checking."""
    xT = jnp.transpose(x, (0, 2, 1))
    v3 = jax.nn.relu(jnp.einsum("bnc,kc->bnk", xT, w) + b[None, None, :])
    v4 = jnp.einsum("bnc,bck->bnk", xT, v3)
    v5 = jax.nn.relu(xT * v3) + v3
    return v5 * v4 + v4


if __name__ == "__main__":
    key = jax.random.PRNGKey(0)
    kx, kw, kb = jax.random.split(key, 3)

    # Shapes implied by the module: x1 = randn(1, 2, 2), Linear(2, 2).
    x = jax.random.normal(kx, (1, 2, 2), dtype=jnp.float32)
    bound = 1.0 / jnp.sqrt(2.0)   # kaiming-uniform-like bound = 1/sqrt(fan_in)
    w = jax.random.uniform(kw, (2, 2), minval=-bound, maxval=bound,
                           dtype=jnp.float32)
    b = jax.random.uniform(kb, (2,), minval=-bound, maxval=bound,
                           dtype=jnp.float32)

    out = model_forward(x, w, b)
    out = jax.block_until_ready(out)

    ref = model_forward_ref(x, w, b)
    assert out.shape == (1, 2, 2)
    assert jnp.allclose(out, ref, atol=1e-5, rtol=1e-5)

    print("KERNEL_OK")
</pallas_src>

<mosaic_0001>
module attributes {stable_mosaic.version = 11 : i64} {
  func.func @_model_kernel(%arg0: memref<10xf32, #tpu.memory_space<smem>>, %arg1: memref<2x2xf32, #tpu.memory_space<vmem>>) attributes {dimension_semantics = [], scalar_prefetch = 0 : i64, scratch_operands = 0 : i64, tpu.core_type = #tpu.core_type<tc>} {
    %c0 = arith.constant 0 : index
    %0 = memref.load %arg0[%c0] : memref<10xf32, #tpu.memory_space<smem>>
    %c1 = arith.constant 1 : index
    %1 = memref.load %arg0[%c1] : memref<10xf32, #tpu.memory_space<smem>>
    %c2 = arith.constant 2 : index
    %2 = memref.load %arg0[%c2] : memref<10xf32, #tpu.memory_space<smem>>
    %c3 = arith.constant 3 : index
    %3 = memref.load %arg0[%c3] : memref<10xf32, #tpu.memory_space<smem>>
    %c4 = arith.constant 4 : index
    %4 = memref.load %arg0[%c4] : memref<10xf32, #tpu.memory_space<smem>>
    %c5 = arith.constant 5 : index
    %5 = memref.load %arg0[%c5] : memref<10xf32, #tpu.memory_space<smem>>
    %c6 = arith.constant 6 : index
    %6 = memref.load %arg0[%c6] : memref<10xf32, #tpu.memory_space<smem>>
    %c7 = arith.constant 7 : index
    %7 = memref.load %arg0[%c7] : memref<10xf32, #tpu.memory_space<smem>>
    %c8 = arith.constant 8 : index
    %8 = memref.load %arg0[%c8] : memref<10xf32, #tpu.memory_space<smem>>
    %c9 = arith.constant 9 : index
    %9 = memref.load %arg0[%c9] : memref<10xf32, #tpu.memory_space<smem>>
    %10 = tpu.iota {dimensions = array<i32: 0>} : vector<2x2xi32>
    %11 = tpu.iota {dimensions = array<i32: 1>} : vector<2x2xi32>
    %c0_i32 = arith.constant 0 : i32
    %12 = vector.broadcast %c0_i32 : i32 to vector<2x2xi32>
    %13 = arith.cmpi eq, %10, %12 : vector<2x2xi32>
    %c0_i32_0 = arith.constant 0 : i32
    %14 = vector.broadcast %c0_i32_0 : i32 to vector<2x2xi32>
    %15 = arith.cmpi eq, %11, %14 : vector<2x2xi32>
    %16 = vector.broadcast %0 : f32 to vector<2x2xf32>
    %17 = vector.broadcast %1 : f32 to vector<2x2xf32>
    %18 = arith.select %13, %16, %17 : vector<2x2xi1>, vector<2x2xf32>
    %19 = vector.broadcast %2 : f32 to vector<2x2xf32>
    %20 = vector.broadcast %3 : f32 to vector<2x2xf32>
    %21 = arith.select %13, %19, %20 : vector<2x2xi1>, vector<2x2xf32>
    %22 = arith.select %15, %18, %21 : vector<2x2xi1>, vector<2x2xf32>
    %23 = vector.broadcast %4 : f32 to vector<2x2xf32>
    %24 = vector.broadcast %6 : f32 to vector<2x2xf32>
    %25 = arith.select %15, %23, %24 : vector<2x2xi1>, vector<2x2xf32>
    %26 = vector.broadcast %5 : f32 to vector<2x2xf32>
    %27 = vector.broadcast %7 : f32 to vector<2x2xf32>
    %28 = arith.select %15, %26, %27 : vector<2x2xi1>, vector<2x2xf32>
    %29 = vector.broadcast %8 : f32 to vector<2x2xf32>
    %30 = vector.broadcast %9 : f32 to vector<2x2xf32>
    %31 = arith.select %15, %29, %30 : vector<2x2xi1>, vector<2x2xf32>
    %32 = vector.broadcast %0 : f32 to vector<2x2xf32>
    %33 = arith.mulf %32, %25 : vector<2x2xf32>
    %34 = vector.broadcast %2 : f32 to vector<2x2xf32>
    %35 = arith.mulf %34, %28 : vector<2x2xf32>
    %36 = arith.addf %33, %35 : vector<2x2xf32>
    %37 = arith.addf %36, %31 : vector<2x2xf32>
    %cst = arith.constant 0.000000e+00 : f32
    %38 = vector.broadcast %cst : f32 to vector<2x2xf32>
    %39 = arith.maximumf %37, %38 : vector<2x2xf32>
    %40 = vector.broadcast %1 : f32 to vector<2x2xf32>
    %41 = arith.mulf %40, %25 : vector<2x2xf32>
    %42 = vector.broadcast %3 : f32 to vector<2x2xf32>
    %43 = arith.mulf %42, %28 : vector<2x2xf32>
    %44 = arith.addf %41, %43 : vector<2x2xf32>
    %45 = arith.addf %44, %31 : vector<2x2xf32>
    %cst_1 = arith.constant 0.000000e+00 : f32
    %46 = vector.broadcast %cst_1 : f32 to vector<2x2xf32>
    %47 = arith.maximumf %45, %46 : vector<2x2xf32>
    %48 = arith.select %13, %39, %47 : vector<2x2xi1>, vector<2x2xf32>
    %49 = arith.mulf %18, %39 : vector<2x2xf32>
    %50 = arith.mulf %21, %47 : vector<2x2xf32>
    %51 = arith.addf %49, %50 : vector<2x2xf32>
    %52 = arith.mulf %22, %48 : vector<2x2xf32>
    %cst_2 = arith.constant 0.000000e+00 : f32
    %53 = vector.broadcast %cst_2 : f32 to vector<2x2xf32>
    %54 = arith.maximumf %52, %53 : vector<2x2xf32>
    %55 = arith.addf %54, %48 : vector<2x2xf32>
    %56 = arith.mulf %55, %51 : vector<2x2xf32>
    %57 = arith.addf %56, %51 : vector<2x2xf32>
    %c0_3 = arith.constant 0 : index
    %c0_4 = arith.constant 0 : index
    %58 = vector.load %arg1[%c0_3, %c0_4] : memref<2x2xf32, #tpu.memory_space<vmem>>, vector<2x2xf32>
    tpu.vector_store %arg1[%c0_3, %c0_4], %57 {strides = array<i32>} : memref<2x2xf32, #tpu.memory_space<vmem>>, vector<2x2xf32>,
    return
  }
}

</mosaic_0001>

<llo_original>
// kernel: model_forward.1
$region0: #{model_forward.1}
  #allocation0 [shape = 'u32[]', space=smem, size = 0x4, offset = 0x4, fixed_abs, tag = 'smem constant byte address 0x4 - core index']
  #allocation1 [shape = 'u32[72,128]{1,0:T(1,128)}', space=vmem, size = 0x9000, scoped, tag = 'internal scratch']
  %s0 = inlined_call_operand.vmem [shape: f32[10], index: 0, kind: input, shape index: {}]
  %s1 = inlined_call_operand.hbm [shape: f32[2,2], index: 1, kind: output, shape index: {}]
  %s2 = sld [smem:[#allocation0]]
  $region18: #{model_forward.1} parent=0
    _
  %s4 = ssub.s32 1, %s2
  %s5 = scalar_select 0, %s4, %s2
  $region1: #{model_forward.1} parent=0
    #allocation2 [shape = 'u8[512]{0}', space=smem, size = 0x200, scoped, tag = 'input window, operand 0, single buffered']
    #allocation3 [shape = 's32[1]{0}', space=sflag, size = 0x4, scoped, tag = 'scoped memory for model_forward.1']
    #allocation4 [shape = 's32[1]{0}', space=sflag, size = 0x4, scoped, tag = 'scoped memory for model_forward.1']
    #allocation5 [shape = 'u8[1024]{0}', space=vmem, size = 0x400, scoped, tag = 'output window, operand 0, single buffered']
    %6 = vsyncpa [#allocation4], 0
    %7 = vsyncpa [#allocation3], 0
    // Predicated region
    $region2: #{model_forward.1} parent=1 // pred_check
      _
    $region3: #{model_forward.1} parent=1 // pred_check_branch
      %9 = sbr.rel (0) target = $region5
    $region4: #{model_forward.1} parent=1 // pred_region
      %11 = vsyncadd [#allocation4], 0
      %s13 = sshll.u32 %s0, 4
      %s14 = int_to_ptr.vmem [resolvable:$true] %s13
      %16 = dma.vmem_to_smem %s14, 16, [#allocation2], [#allocation4]
    $region5: #{model_forward.1} parent=1 // pred_fallthru
      _
    // Predicated region
    $region6: #{model_forward.1} parent=1 // pred_check
      _
    $region7: #{model_forward.1} parent=1 // pred_check_branch
      %18 = sbr.rel (0) target = $region9
    $region8: #{model_forward.1} parent=1 // pred_region
      %20 = dma.done [#allocation4], 16
    $region9: #{model_forward.1} parent=1 // pred_fallthru
      _
    %21 = sfence
    %s22 = sld [smem:[#allocation2]]
    %s23 = sld [smem:[#allocation2 + $0x1]]
    %s24 = sld [smem:[#allocation2 + $0x2]]
    %s25 = sld [smem:[#allocation2 + $0x3]]
    %s26 = sld [smem:[#allocation2 + $0x4]]
    %s27 = sld [smem:[#allocation2 + $0x5]]
    %s28 = sld [smem:[#allocation2 + $0x6]]
    %s29 = sld [smem:[#allocation2 + $0x7]]
    %s30 = sld [smem:[#allocation2 + $0x8]]
    %s31 = sld [smem:[#allocation2 + $0x9]]
    %v32 = vlaneseq
    %v33 = vshrl.u32 %v32, 7
    %v34 = vlaneseq
    %v35 = vand.u32 %v34, 127
    %vm36 = vcmp.eq.s32.totalorder %v33, 0
    %vm37 = vcmp.eq.s32.totalorder %v35, 0
    %v38 = vstv %s22
    %v39 = vstv %s23
    %v40 = vsel %vm36, %v38, %v39
    %v41 = vstv %s24
    %v42 = vstv %s25
    %v43 = vsel %vm36, %v41, %v42
    %v44 = vsel %vm37, %v40, %v43
    %v45 = vstv %s26
    %v46 = vstv %s28
    %v47 = vsel %vm37, %v45, %v46
    %v48 = vstv %s27
    %v49 = vstv %s29
    %v50 = vsel %vm37, %v48, %v49
    %v51 = vstv %s30
    %v52 = vstv %s31
    %v53 = vsel %vm37, %v51, %v52
    %v54 = vmul.f32 %v38, %v47
    %v55 = vmul.f32 %v41, %v50
    %v56 = vadd.f32 %v54, %v55
    %v57 = vadd.f32 %v56, %v53
    %v58 = vmax.f32 %v57, 0.0
    %v59 = vmul.f32 %v39, %v47
    %v60 = vmul.f32 %v42, %v50
    %v61 = vadd.f32 %v59, %v60
    %v62 = vadd.f32 %v61, %v53
    %v63 = vmax.f32 %v62, 0.0
    %v64 = vsel %vm36, %v58, %v63
    %v65 = vmul.f32 %v40, %v58
    %v66 = vmul.f32 %v43, %v63
    %v67 = vadd.f32 %v65, %v66
    %v68 = vmul.f32 %v44, %v64
    %v69 = vmax.f32 %v68, 0.0
    %v70 = vadd.f32 %v69, %v64
    %v71 = vmul.f32 %v70, %v67
    %v72 = vadd.f32 %v71, %v67
    %vm73 = vcmask 9216
    %74 = vst.msk [vmem:[#allocation5] sm:$0x3] %vm73, %v72
    // Predicated region
    $region10: #{model_forward.1} parent=1 // pred_check
      _
    $region11: #{model_forward.1} parent=1 // pred_check_branch
      %76 = sbr.rel (0) target = $region13
    $region12: #{model_forward.1} parent=1 // pred_region
      %78 = vsyncadd [#allocation3], 0
      %s80 = sshll.u32 [#allocation5], 4
      %s81 = int_to_ptr.vmem [resolvable:$true] %s80
      %s82 = sshll.u32 %s1, 4
      %s83 = int_to_ptr.hbm [resolvable:$true] %s82
      %85 = dma.vmem_to_hbm [thread:$0]  %s81, 32, %s83, [#allocation3]
    $region13: #{model_forward.1} parent=1 // pred_fallthru
      _
    // Predicated region
    $region14: #{model_forward.1} parent=1 // pred_check
      _
    $region15: #{model_forward.1} parent=1 // pred_check_branch
      %87 = sbr.rel (0) target = $region17
    $region16: #{model_forward.1} parent=1 // pred_region
      %89 = dma.done [#allocation3], 32
    $region17: #{model_forward.1} parent=1 // pred_fallthru
      _
    %90 = vsyncpa [#allocation3], 1
    %91 = vsyncpa [#allocation4], 1

</llo_original>
